<compile_context>
chip_gen: v7x
topology: tpu7x:2x2x1
jax: 0.10.0
libtpu: 0.0.40
codegen_flags: <defaults>
</compile_context>

<pallas_src>
import functools

import jax
import jax.numpy as jnp
from jax.experimental import pallas as pl
from jax.experimental.pallas import tpu as pltpu

_EPS = 1e-5  # nn.BatchNorm1d default eps


def _round_up(x, m):
    return ((x + m - 1) // m) * m


def _pad_to(a, shape):
    return jnp.pad(a, [(0, t - s) for s, t in zip(a.shape, shape)])


def _actor_kernel(x_ref, w1_ref, w2_ref, w3_ref, b3_ref, o_ref, *, n_valid, inv_n):
    """Fused fc1 -> bn1 -> relu -> fc2 -> bn2 -> relu -> fc3 -> tanh."""
    b_pad = x_ref.shape[0]

    def bn_relu(h):
        # One-pass batch-norm (biased var, gamma=1, beta=0) folded into a
        # single scale/shift, fused with relu:
        #   s = rsqrt(var + eps), t = -mu * s, y = max(h * s + t, 0)
        # Padded rows AND padded columns of `h` are exactly 0, so plain column
        # sums over the padded tile divided by the *true* batch size (inv_n)
        # yield the correct statistics; padded columns normalise back to 0.
        mu = jnp.sum(h, axis=0, keepdims=True) * inv_n
        ex2 = jnp.sum(h * h, axis=0, keepdims=True) * inv_n
        var = jnp.maximum(ex2 - mu * mu, 0.0)   # clamp fp round-off
        s = jax.lax.rsqrt(var + _EPS)
        t = -mu * s
        return jnp.maximum(h * s + t, 0.0)

    # ---- fc1 + bn1 + relu ----  (bf16 MXU operands, f32 accumulation)
    # Pre-BN bias dropped: it cannot affect a batch-stat BN with beta=0.
    h = jnp.dot(x_ref[...], w1_ref[...], preferred_element_type=jnp.float32)
    h = bn_relu(h)

    # Zero the padded batch rows once (BN shift made them nonzero) so every
    # downstream matmul / statistic sees exact zeros there.
    if n_valid < b_pad:  # static decision at trace time
        row_ids = jax.lax.broadcasted_iota(jnp.int32, (b_pad, 1), 0)
        h = jnp.where(row_ids < n_valid, h, 0.0)

    # ---- fc2 + bn2 + relu ----
    h = jnp.dot(h.astype(jnp.bfloat16), w2_ref[...],
                preferred_element_type=jnp.float32)
    h = bn_relu(h)

    # ---- fc3 + tanh ----  (lane-dense, 128-multiple-wide padded output)
    y = jnp.dot(h.astype(jnp.bfloat16), w3_ref[...],
                preferred_element_type=jnp.float32) + b3_ref[...]
    o_ref[...] = jnp.tanh(y).astype(o_ref.dtype)


def prepare_params(w1, b1, w2, b2, w3, b3):
    """One-time padding + bf16 cast of the weights (off the per-call path).

    b1/b2 are accepted for API parity with the PyTorch module but dropped:
    a pre-BN bias with batch statistics and beta=0 cannot change the output.
    Weights are stored (in_features, out_features) so matmuls are plain x @ W.
    """
    S, H1 = w1.shape
    H2 = w2.shape[1]
    A = w3.shape[1]
    Sp, H1p, H2p, Ap = (_round_up(d, 128) for d in (S, H1, H2, A))
    w1_p = _pad_to(w1, (Sp, H1p)).astype(jnp.bfloat16)
    w2_p = _pad_to(w2, (H1p, H2p)).astype(jnp.bfloat16)
    w3_p = _pad_to(w3, (H2p, Ap)).astype(jnp.bfloat16)
    b3_p = _pad_to(b3[None, :].astype(jnp.float32), (1, Ap))
    return w1_p, w2_p, w3_p, b3_p


@functools.partial(jax.jit, static_argnames=("action_size",))
def actor_forward(states, w1_p, w2_p, w3_p, b3_p, *, action_size):
    """Forward with pre-padded bf16 params; only `states` is padded per call."""
    if states.ndim == 1:
        states = states[None, :]

    B, S = states.shape
    Sp = w1_p.shape[0]
    H1p = w1_p.shape[1]
    H2p = w2_p.shape[1]
    Ap = w3_p.shape[1]
    Bp = _round_up(B, 16)  # bf16 sublane tile

    x_p = _pad_to(states.astype(jnp.float32), (Bp, Sp)).astype(jnp.bfloat16)

    kernel = functools.partial(_actor_kernel, n_valid=B, inv_n=1.0 / B)

    flops = 2 * Bp * (Sp * H1p + H1p * H2p + H2p * Ap)
    transcendentals = Bp * Ap + H1p + H2p  # tanh + per-column rsqrt
    operand_bytes = ((x_p.size + w1_p.size + w2_p.size + w3_p.size) * 2
                     + b3_p.size * 4 + Bp * Ap * 2)
    # Explicit VMEM budget: operands + f32 intermediates, with headroom,
    # capped below v7x's 64 MiB physical VMEM.
    interm_bytes = 3 * Bp * max(H1p, H2p, Ap) * 4
    vmem_limit = int(min(max(2 * (operand_bytes + interm_bytes), 8 << 20), 64 << 20))

    vmem = pl.BlockSpec(memory_space=pltpu.MemorySpace.VMEM)
    out = pl.pallas_call(
        kernel,
        out_shape=jax.ShapeDtypeStruct((Bp, Ap), jnp.bfloat16),
        in_specs=[vmem] * 5,          # small model: whole arrays resident in VMEM
        out_specs=vmem,
        compiler_params=pltpu.CompilerParams(vmem_limit_bytes=vmem_limit),
        cost_estimate=pl.CostEstimate(
            flops=flops,
            transcendentals=transcendentals,
            bytes_accessed=operand_bytes,
        ),
    )(x_p, w1_p, w2_p, w3_p, b3_p)

    return out[:B, :action_size]


def init_actor_params(key, state_size, action_size, hidden1=400, hidden2=300):
    """Deterministic init mirroring the PyTorch module's weight_initialiser().

    hidden_init() uses weight.size()[0] == out_features as the "fan-in", so
    lim = 1/sqrt(out_features) for fc1/fc2 — replicated faithfully.  Biases
    keep PyTorch's default Linear init U(-1/sqrt(in), 1/sqrt(in)).
    """
    ks = jax.random.split(key, 6)
    lim1 = 1.0 / jnp.sqrt(hidden1)
    lim2 = 1.0 / jnp.sqrt(hidden2)
    lim3 = 3e-3
    # weights stored (in_features, out_features)
    w1 = jax.random.uniform(ks[0], (state_size, hidden1), jnp.float32, -lim1, lim1)
    w2 = jax.random.uniform(ks[1], (hidden1, hidden2), jnp.float32, -lim2, lim2)
    w3 = jax.random.uniform(ks[2], (hidden2, action_size), jnp.float32, -lim3, lim3)
    bl1 = 1.0 / jnp.sqrt(state_size)
    bl2 = 1.0 / jnp.sqrt(hidden1)
    bl3 = 1.0 / jnp.sqrt(hidden2)
    b1 = jax.random.uniform(ks[3], (hidden1,), jnp.float32, -bl1, bl1)
    b2 = jax.random.uniform(ks[4], (hidden2,), jnp.float32, -bl2, bl2)
    b3 = jax.random.uniform(ks[5], (action_size,), jnp.float32, -bl3, bl3)
    return w1, b1, w2, b2, w3, b3


def _reference_forward(states, w1, b1, w2, b2, w3, b3, *, bf16_matmul=False):
    """Pure-JAX reference WITH the b1/b2 adds (proves dropping them is exact).

    bf16_matmul=True mirrors the kernel's MXU operand precision.
    """
    if states.ndim == 1:
        states = states[None, :]
    cast = (lambda a: a.astype(jnp.bfloat16)) if bf16_matmul else (lambda a: a)

    def bn(h):
        mu = jnp.mean(h, axis=0, keepdims=True)
        var = jnp.mean((h - mu) ** 2, axis=0, keepdims=True)
        return (h - mu) / jnp.sqrt(var + _EPS)

    h = jax.nn.relu(bn(jnp.dot(cast(states), cast(w1),
                               preferred_element_type=jnp.float32) + b1))
    h = jax.nn.relu(bn(jnp.dot(cast(h), cast(w2),
                               preferred_element_type=jnp.float32) + b2))
    return jnp.tanh(jnp.dot(cast(h), cast(w3),
                            preferred_element_type=jnp.float32) + b3)


if __name__ == "__main__":
    # Small shapes consistent with the module (batch=8, state=32, action=8,
    # hidden1=64, hidden2=32).  Padded internally to (16, 128/128/128/128).
    B, S, A, H1, H2 = 8, 32, 8, 64, 32

    key = jax.random.PRNGKey(0)
    pkey, xkey = jax.random.split(key)
    params = init_actor_params(pkey, S, A, hidden1=H1, hidden2=H2)
    states = jax.random.normal(xkey, (B, S), jnp.float32)

    # One-time weight preparation (padding + bf16 cast off the hot path).
    w1_p, w2_p, w3_p, b3_p = jax.block_until_ready(prepare_params(*params))

    out = actor_forward(states, w1_p, w2_p, w3_p, b3_p, action_size=A)
    out = jax.block_until_ready(out)
    assert out.shape == (B, A)
    out_f32 = out.astype(jnp.float32)

    # Precision-matched reference (bf16 matmul operands, f32 elsewhere);
    # tolerance widened for the bf16 output cast of the kernel.
    ref_bf16 = _reference_forward(states, *params, bf16_matmul=True)
    assert jnp.allclose(out_f32, ref_bf16, atol=1e-2, rtol=1e-2), \
        "mismatch vs bf16-matched reference"

    # Sanity bound vs full-f32 reference (bf16 operand/output rounding only).
    ref_f32 = _reference_forward(states, *params, bf16_matmul=False)
    assert jnp.allclose(out_f32, ref_f32, atol=5e-2, rtol=5e-2), \
        "mismatch vs f32 reference"

    print("KERNEL_OK")
</pallas_src>

<mosaic_0001>
module attributes {stable_mosaic.version = 11 : i64} {
  func.func @_actor_kernel(%arg0: memref<16x128xbf16, #tpu.memory_space<vmem>>, %arg1: memref<128x128xbf16, #tpu.memory_space<vmem>>, %arg2: memref<128x128xbf16, #tpu.memory_space<vmem>>, %arg3: memref<128x128xbf16, #tpu.memory_space<vmem>>, %arg4: memref<1x128xf32, #tpu.memory_space<vmem>>, %arg5: memref<16x128xbf16, #tpu.memory_space<vmem>>) attributes {dimension_semantics = [], scalar_prefetch = 0 : i64, scratch_operands = 0 : i64, tpu.core_type = #tpu.core_type<tc>} {
    %c0 = arith.constant 0 : index
    %c0_0 = arith.constant 0 : index
    %0 = vector.load %arg0[%c0, %c0_0] : memref<16x128xbf16, #tpu.memory_space<vmem>>, vector<16x128xbf16>
    %c0_1 = arith.constant 0 : index
    %c0_2 = arith.constant 0 : index
    %1 = vector.load %arg1[%c0_1, %c0_2] : memref<128x128xbf16, #tpu.memory_space<vmem>>, vector<128x128xbf16>
    %cst = arith.constant dense<0.000000e+00> : vector<16x128xf32>
    %2 = tpu.matmul %0, %1, %cst {dimension_numbers = #tpu.dot_dimension_numbers<[1], [0], [0], [1], [0, 0, 1, 1], [], []>} : vector<16x128xbf16>, vector<128x128xbf16>, vector<16x128xf32> -> vector<16x128xf32>
    %cst_3 = arith.constant dense<0.000000e+00> : vector<128xf32>
    %3 = vector.multi_reduction <add>, %2, %cst_3 [0] : vector<16x128xf32> to vector<128xf32>
    %4 = vector.shape_cast %3 : vector<128xf32> to vector<1x128xf32>
    %cst_4 = arith.constant 1.250000e-01 : f32
    %5 = vector.broadcast %cst_4 : f32 to vector<1x128xf32>
    %6 = arith.mulf %4, %5 : vector<1x128xf32>
    %7 = arith.mulf %2, %2 : vector<16x128xf32>
    %cst_5 = arith.constant dense<0.000000e+00> : vector<128xf32>
    %8 = vector.multi_reduction <add>, %7, %cst_5 [0] : vector<16x128xf32> to vector<128xf32>
    %9 = vector.shape_cast %8 : vector<128xf32> to vector<1x128xf32>
    %cst_6 = arith.constant 1.250000e-01 : f32
    %10 = vector.broadcast %cst_6 : f32 to vector<1x128xf32>
    %11 = arith.mulf %9, %10 : vector<1x128xf32>
    %12 = arith.mulf %6, %6 : vector<1x128xf32>
    %13 = arith.subf %11, %12 : vector<1x128xf32>
    %cst_7 = arith.constant 0.000000e+00 : f32
    %14 = vector.broadcast %cst_7 : f32 to vector<1x128xf32>
    %15 = arith.maximumf %13, %14 : vector<1x128xf32>
    %cst_8 = arith.constant 9.99999974E-6 : f32
    %16 = vector.broadcast %cst_8 : f32 to vector<1x128xf32>
    %17 = arith.addf %15, %16 : vector<1x128xf32>
    %18 = math.rsqrt %17 : vector<1x128xf32>
    %cst_9 = arith.constant 0.000000e+00 : f32
    %19 = vector.broadcast %cst_9 : f32 to vector<1x128xf32>
    %20 = arith.subf %19, %6 : vector<1x128xf32>
    %21 = arith.mulf %20, %18 : vector<1x128xf32>
    %22 = vector.broadcast %18 : vector<1x128xf32> to vector<16x128xf32>
    %23 = arith.mulf %2, %22 : vector<16x128xf32>
    %24 = vector.broadcast %21 : vector<1x128xf32> to vector<16x128xf32>
    %25 = arith.addf %23, %24 : vector<16x128xf32>
    %cst_10 = arith.constant 0.000000e+00 : f32
    %26 = vector.broadcast %cst_10 : f32 to vector<16x128xf32>
    %27 = arith.maximumf %25, %26 : vector<16x128xf32>
    %28 = tpu.iota {dimensions = array<i32: 0>} : vector<16x1xi32>
    %c8_i32 = arith.constant 8 : i32
    %29 = vector.broadcast %c8_i32 : i32 to vector<16x1xi32>
    %30 = arith.cmpi slt, %28, %29 : vector<16x1xi32>
    %cst_11 = arith.constant 0.000000e+00 : f32
    %31 = vector.shape_cast %30 : vector<16x1xi1> to vector<16x1xi1>
    %32 = vector.broadcast %31 : vector<16x1xi1> to vector<16x128xi1>
    %33 = vector.broadcast %cst_11 : f32 to vector<16x128xf32>
    %34 = arith.select %32, %27, %33 : vector<16x128xi1>, vector<16x128xf32>
    %35 = arith.truncf %34 : vector<16x128xf32> to vector<16x128xbf16>
    %c0_12 = arith.constant 0 : index
    %c0_13 = arith.constant 0 : index
    %36 = vector.load %arg2[%c0_12, %c0_13] : memref<128x128xbf16, #tpu.memory_space<vmem>>, vector<128x128xbf16>
    %cst_14 = arith.constant dense<0.000000e+00> : vector<16x128xf32>
    %37 = tpu.matmul %35, %36, %cst_14 {dimension_numbers = #tpu.dot_dimension_numbers<[1], [0], [0], [1], [0, 0, 1, 1], [], []>} : vector<16x128xbf16>, vector<128x128xbf16>, vector<16x128xf32> -> vector<16x128xf32>
    %cst_15 = arith.constant dense<0.000000e+00> : vector<128xf32>
    %38 = vector.multi_reduction <add>, %37, %cst_15 [0] : vector<16x128xf32> to vector<128xf32>
    %39 = vector.shape_cast %38 : vector<128xf32> to vector<1x128xf32>
    %cst_16 = arith.constant 1.250000e-01 : f32
    %40 = vector.broadcast %cst_16 : f32 to vector<1x128xf32>
    %41 = arith.mulf %39, %40 : vector<1x128xf32>
    %42 = arith.mulf %37, %37 : vector<16x128xf32>
    %cst_17 = arith.constant dense<0.000000e+00> : vector<128xf32>
    %43 = vector.multi_reduction <add>, %42, %cst_17 [0] : vector<16x128xf32> to vector<128xf32>
    %44 = vector.shape_cast %43 : vector<128xf32> to vector<1x128xf32>
    %cst_18 = arith.constant 1.250000e-01 : f32
    %45 = vector.broadcast %cst_18 : f32 to vector<1x128xf32>
    %46 = arith.mulf %44, %45 : vector<1x128xf32>
    %47 = arith.mulf %41, %41 : vector<1x128xf32>
    %48 = arith.subf %46, %47 : vector<1x128xf32>
    %cst_19 = arith.constant 0.000000e+00 : f32
    %49 = vector.broadcast %cst_19 : f32 to vector<1x128xf32>
    %50 = arith.maximumf %48, %49 : vector<1x128xf32>
    %cst_20 = arith.constant 9.99999974E-6 : f32
    %51 = vector.broadcast %cst_20 : f32 to vector<1x128xf32>
    %52 = arith.addf %50, %51 : vector<1x128xf32>
    %53 = math.rsqrt %52 : vector<1x128xf32>
    %cst_21 = arith.constant 0.000000e+00 : f32
    %54 = vector.broadcast %cst_21 : f32 to vector<1x128xf32>
    %55 = arith.subf %54, %41 : vector<1x128xf32>
    %56 = arith.mulf %55, %53 : vector<1x128xf32>
    %57 = vector.broadcast %53 : vector<1x128xf32> to vector<16x128xf32>
    %58 = arith.mulf %37, %57 : vector<16x128xf32>
    %59 = vector.broadcast %56 : vector<1x128xf32> to vector<16x128xf32>
    %60 = arith.addf %58, %59 : vector<16x128xf32>
    %cst_22 = arith.constant 0.000000e+00 : f32
    %61 = vector.broadcast %cst_22 : f32 to vector<16x128xf32>
    %62 = arith.maximumf %60, %61 : vector<16x128xf32>
    %63 = arith.truncf %62 : vector<16x128xf32> to vector<16x128xbf16>
    %c0_23 = arith.constant 0 : index
    %c0_24 = arith.constant 0 : index
    %64 = vector.load %arg3[%c0_23, %c0_24] : memref<128x128xbf16, #tpu.memory_space<vmem>>, vector<128x128xbf16>
    %cst_25 = arith.constant dense<0.000000e+00> : vector<16x128xf32>
    %65 = tpu.matmul %63, %64, %cst_25 {dimension_numbers = #tpu.dot_dimension_numbers<[1], [0], [0], [1], [0, 0, 1, 1], [], []>} : vector<16x128xbf16>, vector<128x128xbf16>, vector<16x128xf32> -> vector<16x128xf32>
    %c0_26 = arith.constant 0 : index
    %c0_27 = arith.constant 0 : index
    %66 = vector.load %arg4[%c0_26, %c0_27] : memref<1x128xf32, #tpu.memory_space<vmem>>, vector<1x128xf32>
    %67 = vector.broadcast %66 : vector<1x128xf32> to vector<16x128xf32>
    %68 = arith.addf %65, %67 : vector<16x128xf32>
    %69 = math.tanh %68 : vector<16x128xf32>
    %70 = arith.truncf %69 : vector<16x128xf32> to vector<16x128xbf16>
    %c0_28 = arith.constant 0 : index
    %c0_29 = arith.constant 0 : index
    %71 = vector.load %arg5[%c0_28, %c0_29] : memref<16x128xbf16, #tpu.memory_space<vmem>>, vector<16x128xbf16>
    tpu.vector_store %arg5[%c0_28, %c0_29], %70 {strides = array<i32>} : memref<16x128xbf16, #tpu.memory_space<vmem>>, vector<16x128xbf16>,
    return
  }
}

</mosaic_0001>

<llo_original>
// kernel: actor_forward.1
$region0: #{actor_forward.1}
  #allocation0 [shape = 'u32[]', space=smem, size = 0x4, offset = 0x4, fixed_abs, tag = 'smem constant byte address 0x4 - core index']
  #allocation1 [shape = 'u32[144,128]{1,0:T(1,128)}', space=vmem, size = 0x12000, scoped, tag = 'internal scratch']
  %s0 = inlined_call_operand.vmem [shape: bf16[16,128], index: 0, kind: input, shape index: {}]
  %s1 = inlined_call_operand.hbm [shape: bf16[128,128], index: 1, kind: input, shape index: {}]
  %s2 = inlined_call_operand.hbm [shape: bf16[128,128], index: 2, kind: input, shape index: {}]
  %s3 = inlined_call_operand.hbm [shape: bf16[128,128], index: 3, kind: input, shape index: {}]
  %s4 = inlined_call_operand.vmem [shape: f32[1,128], index: 4, kind: input, shape index: {}]
  %s5 = inlined_call_operand.vmem [shape: bf16[16,128], index: 5, kind: output, shape index: {}]
  %s6 = sld [smem:[#allocation0]]
  $region42: #{actor_forward.1} parent=0
    _
  %s8 = ssub.s32 1, %s6
  %s9 = scalar_select 0, %s8, %s6
  $region1: #{actor_forward.1} parent=0
    #allocation2 [shape = 'u8[32768]{0}', space=vmem, size = 0x8000, scoped, tag = 'input window, operand 1, single buffered']
    #allocation3 [shape = 's32[1]{0}', space=sflag, size = 0x4, scoped, tag = 'scoped memory for actor_forward.1']
    #allocation4 [shape = 'u8[32768]{0}', space=vmem, size = 0x8000, scoped, tag = 'input window, operand 2, single buffered']
    #allocation5 [shape = 's32[1]{0}', space=sflag, size = 0x4, scoped, tag = 'scoped memory for actor_forward.1']
    #allocation6 [shape = 'u8[32768]{0}', space=vmem, size = 0x8000, scoped, tag = 'input window, operand 3, single buffered']
    %10 = vsyncpa [#allocation3], 0
    %11 = vsyncpa [#allocation5], 0
    // Predicated region
    $region2: #{actor_forward.1} parent=1 // pred_check
      _
    $region3: #{actor_forward.1} parent=1 // pred_check_branch
      %13 = sbr.rel (0) target = $region5
    $region4: #{actor_forward.1} parent=1 // pred_region
      _
    $region5: #{actor_forward.1} parent=1 // pred_fallthru
      _
    // Predicated region
    $region6: #{actor_forward.1} parent=1 // pred_check
      _
    $region7: #{actor_forward.1} parent=1 // pred_check_branch
      %15 = sbr.rel (0) target = $region9
    $region8: #{actor_forward.1} parent=1 // pred_region
      %s17 = ssub.s32 1024, 1024
      %18 = vsyncadd [#allocation3], %s17
      %s19 = sshll.u32 [#allocation2], 4
      %s20 = int_to_ptr.vmem [resolvable:$true] %s19
      %25 = dma.hbm_to_vmem [thread:$0]  %s1, 1024, %s20, [#allocation3], 64, 64, 4
    $region9: #{actor_forward.1} parent=1 // pred_fallthru
      _
    // Predicated region
    $region10: #{actor_forward.1} parent=1 // pred_check
      _
    $region11: #{actor_forward.1} parent=1 // pred_check_branch
      %27 = sbr.rel (0) target = $region13
    $region12: #{actor_forward.1} parent=1 // pred_region
      %s29 = ssub.s32 1024, 1024
      %30 = vsyncadd [#allocation5], %s29
      %s31 = sshll.u32 [#allocation4], 4
      %s32 = int_to_ptr.vmem [resolvable:$true] %s31
      %37 = dma.hbm_to_vmem [thread:$0]  %s2, 1024, %s32, [#allocation5], 64, 64, 4
    $region13: #{actor_forward.1} parent=1 // pred_fallthru
      _
    // Predicated region
    $region14: #{actor_forward.1} parent=1 // pred_check
      _
    $region15: #{actor_forward.1} parent=1 // pred_check_branch
      %39 = sbr.rel (0) target = $region17
    $region16: #{actor_forward.1} parent=1 // pred_region
      %s41 = ssub.s32 1024, 1024
      %42 = vsyncadd [#allocation5], %s41
      %s43 = sshll.u32 [#allocation6], 4
      %s44 = int_to_ptr.vmem [resolvable:$true] %s43
      %49 = dma.hbm_to_vmem [thread:$0]  %s3, 1024, %s44, [#allocation5], 64, 64, 4
    $region17: #{actor_forward.1} parent=1 // pred_fallthru
      _
    // Predicated region
    $region18: #{actor_forward.1} parent=1 // pred_check
      _
    $region19: #{actor_forward.1} parent=1 // pred_check_branch
      %51 = sbr.rel (0) target = $region21
    $region20: #{actor_forward.1} parent=1 // pred_region
      _
    $region21: #{actor_forward.1} parent=1 // pred_fallthru
      _
    // Predicated region
    $region22: #{actor_forward.1} parent=1 // pred_check
      _
    $region23: #{actor_forward.1} parent=1 // pred_check_branch
      %53 = sbr.rel (0) target = $region25
    $region24: #{actor_forward.1} parent=1 // pred_region
      %54 = dma.done [#allocation3], 1024
    $region25: #{actor_forward.1} parent=1 // pred_fallthru
      _
    // Predicated region
    $region26: #{actor_forward.1} parent=1 // pred_check
      _
    $region27: #{actor_forward.1} parent=1 // pred_check_branch
      %56 = sbr.rel (0) target = $region29
    $region28: #{actor_forward.1} parent=1 // pred_region
      %57 = dma.done [#allocation5], 1024
    $region29: #{actor_forward.1} parent=1 // pred_fallthru
      _
    // Predicated region
    $region30: #{actor_forward.1} parent=1 // pred_check
      _
    $region31: #{actor_forward.1} parent=1 // pred_check_branch
      %59 = sbr.rel (0) target = $region33
    $region32: #{actor_forward.1} parent=1 // pred_region
      %60 = dma.done [#allocation5], 1024
    $region33: #{actor_forward.1} parent=1 // pred_fallthru
      _
    %v62 = vld [vmem:[%s0] sm:$0xf]
    %v63 = vld [vmem:[%s0 + $0x4] sm:$0xf]
    %v64 = vld [vmem:[#allocation2] sm:$0xf]
    %v65 = vld [vmem:[#allocation2 + $0x4] sm:$0xf]
    %v66 = vld [vmem:[#allocation2 + $0x8] sm:$0xf]
    %v67 = vld [vmem:[#allocation2 + $0xc] sm:$0xf]
    %v68 = vld [vmem:[#allocation2 + $0x10] sm:$0xf]
    %v69 = vld [vmem:[#allocation2 + $0x14] sm:$0xf]
    %v70 = vld [vmem:[#allocation2 + $0x18] sm:$0xf]
    %v71 = vld [vmem:[#allocation2 + $0x1c] sm:$0xf]
    %v72 = vld [vmem:[#allocation2 + $0x20] sm:$0xf]
    %v73 = vld [vmem:[#allocation2 + $0x24] sm:$0xf]
    %v74 = vld [vmem:[#allocation2 + $0x28] sm:$0xf]
    %v75 = vld [vmem:[#allocation2 + $0x2c] sm:$0xf]
    %v76 = vld [vmem:[#allocation2 + $0x30] sm:$0xf]
    %v77 = vld [vmem:[#allocation2 + $0x34] sm:$0xf]
    %v78 = vld [vmem:[#allocation2 + $0x38] sm:$0xf]
    %v79 = vld [vmem:[#allocation2 + $0x3c] sm:$0xf]
    %v82 = vunpack.c.l.b16 %v62
    %v83 = vunpack.c.l.b16 %v63
    %v84 = vpack.c.b16 %v83, %v82
    %v102 = vunpack.c.l.b16 %v64
    %v103 = vunpack.c.l.b16 %v65
    %v104 = vunpack.c.l.b16 %v66
    %v105 = vunpack.c.l.b16 %v67
    %v106 = vunpack.c.l.b16 %v68
    %v107 = vunpack.c.l.b16 %v69
    %v108 = vunpack.c.l.b16 %v70
    %v109 = vunpack.c.l.b16 %v71
    %v110 = vunpack.c.l.b16 %v72
    %v111 = vunpack.c.l.b16 %v73
    %v112 = vunpack.c.l.b16 %v74
    %v113 = vunpack.c.l.b16 %v75
    %v114 = vunpack.c.l.b16 %v76
    %v115 = vunpack.c.l.b16 %v77
    %v116 = vunpack.c.l.b16 %v78
    %v117 = vunpack.c.l.b16 %v79
    %v118 = vpack.c.b16 %v103, %v102
    %v119 = vpack.c.b16 %v105, %v104
    %v120 = vpack.c.b16 %v107, %v106
    %v121 = vpack.c.b16 %v109, %v108
    %v122 = vpack.c.b16 %v111, %v110
    %v123 = vpack.c.b16 %v113, %v112
    %v124 = vpack.c.b16 %v115, %v114
    %v125 = vpack.c.b16 %v117, %v116
    %134 = vmatprep.subr.bf16.mxu0 0
    %135 = vmatpush1.bf16.msra.mxu0 %v118
    %136 = vmatprep.subr.bf16.mxu0 0
    %137 = vmatpush1.bf16.msra.mxu0 %v119
    %138 = vmatprep.subr.bf16.mxu0 0
    %139 = vmatpush1.bf16.msra.mxu0 %v120
    %140 = vmatprep.subr.bf16.mxu0 0
    %141 = vmatpush1.bf16.msra.mxu0 %v121
    %142 = vmatprep.subr.bf16.mxu0 0
    %143 = vmatpush1.bf16.msra.mxu0 %v122
    %144 = vmatprep.subr.bf16.mxu0 0
    %145 = vmatpush1.bf16.msra.mxu0 %v123
    %146 = vmatprep.subr.bf16.mxu0 0
    %147 = vmatpush1.bf16.msra.mxu0 %v124
    %148 = vmatprep.subr.bf16.mxu0 0
    %149 = vmatpush1.bf16.msra.mxu0 %v125
    %150 = vmatprep.subr.bf16.mxu0 0
    %151 = vmatpush1.bf16.msra.mxu0 0
    %152 = vmatprep.subr.bf16.mxu0 0
    %153 = vmatpush1.bf16.msra.mxu0 0
    %154 = vmatprep.subr.bf16.mxu0 0
    %155 = vmatpush1.bf16.msra.mxu0 0
    %156 = vmatprep.subr.bf16.mxu0 0
    %157 = vmatpush1.bf16.msra.mxu0 0
    %158 = vmatprep.subr.bf16.mxu0 0
    %159 = vmatpush1.bf16.msra.mxu0 0
    %160 = vmatprep.subr.bf16.mxu0 0
    %161 = vmatpush1.bf16.msra.mxu0 0
    %162 = vmatprep.subr.bf16.mxu0 0
    %163 = vmatpush1.bf16.msra.mxu0 0
    %164 = vmatprep.subr.bf16.mxu0 0
    %165 = vmatpush1.bf16.msra.mxu0 0
    %166 = vmatprep.mubr.bf16.mxu0 0
    %167 = vmatmul.mubr.bf16.gmra.mrb[0].mxu0 %v84
    %v168 = vpop.f32.mrb[0].mxu0
    %v169 = vadd.f32 0.0, %v168
    %v170 = vpop.f32.mrb[0].mxu0
    %v171 = vpop.f32.mrb[0].mxu0
    %v172 = vadd.f32 0.0, %v171
    %v173 = vpop.f32.mrb[0].mxu0
    %174 = vdwg.mxu0
    %v175 = vadd.f32 %v169, %v172
    %v176 = vrot.slane %v175, 4
    %v177 = vadd.f32 %v175, %v176
    %v178 = vrot.slane %v177, 2
    %v179 = vadd.f32 %v177, %v178
    %v180 = vrot.slane %v179, 1
    %v181 = vadd.f32 %v179, %v180
    %v182 = vmul.f32 %v181, 0.125
    %v183 = vmul.f32 %v169, %v169
    %v184 = vmul.f32 %v172, %v172
    %v185 = vadd.f32 %v183, %v184
    %v186 = vrot.slane %v185, 4
    %v187 = vadd.f32 %v185, %v186
    %v188 = vrot.slane %v187, 2
    %v189 = vadd.f32 %v187, %v188
    %v190 = vrot.slane %v189, 1
    %v191 = vadd.f32 %v189, %v190
    %v192 = vmul.f32 %v191, 0.125
    %v193 = vmul.f32 %v182, %v182
    %v194 = vsub.f32 %v192, %v193
    %v195 = vmax.f32 %v194, 0.0
    %v196 = vadd.f32 %v195, 1e-05
    %v197 = vrsqrt.pop %v196
    %v198 = vsub.f32 0.0, %v182
    %v199 = vmul.f32 %v198, %v197
    %v200 = vmul.f32 %v169, %v197
    %v201 = vmul.f32 %v172, %v197
    %v202 = vadd.f32 %v200, %v199
    %v203 = vadd.f32 %v201, %v199
    %v204 = vmax.f32 %v202, 0.0
    %v205 = vmax.f32 %v203, 0.0
    %v206 = vlaneseq
    %v207 = vshrl.u32 %v206, 7
    %v208 = vadd.s32 %v207, 8
    %vm209 = vcmp.lt.s32.totalorder %v207, 8
    %vm210 = vcmp.lt.s32.totalorder %v208, 8
    %v211 = vsel %vm209, 1, 0
    %v212 = vsel %vm210, 1, 0
    %vm213 = vcmp.eq.s32.totalorder %v211, 1
    %vm214 = vcmp.eq.s32.totalorder %v212, 1
    %v215 = vsel %vm213, %v204, 0.0
    %v216 = vsel %vm214, %v205, 0.0
    %v217 = vpack.c.bf16 %v216, %v215
    %v218 = vld [vmem:[#allocation4] sm:$0xf]
    %v219 = vld [vmem:[#allocation4 + $0x4] sm:$0xf]
    %v220 = vld [vmem:[#allocation4 + $0x8] sm:$0xf]
    %v221 = vld [vmem:[#allocation4 + $0xc] sm:$0xf]
    %v222 = vld [vmem:[#allocation4 + $0x10] sm:$0xf]
    %v223 = vld [vmem:[#allocation4 + $0x14] sm:$0xf]
    %v224 = vld [vmem:[#allocation4 + $0x18] sm:$0xf]
    %v225 = vld [vmem:[#allocation4 + $0x1c] sm:$0xf]
    %v226 = vld [vmem:[#allocation4 + $0x20] sm:$0xf]
    %v227 = vld [vmem:[#allocation4 + $0x24] sm:$0xf]
    %v228 = vld [vmem:[#allocation4 + $0x28] sm:$0xf]
    %v229 = vld [vmem:[#allocation4 + $0x2c] sm:$0xf]
    %v230 = vld [vmem:[#allocation4 + $0x30] sm:$0xf]
    %v231 = vld [vmem:[#allocation4 + $0x34] sm:$0xf]
    %v232 = vld [vmem:[#allocation4 + $0x38] sm:$0xf]
    %v233 = vld [vmem:[#allocation4 + $0x3c] sm:$0xf]
    %v250 = vunpack.c.l.b16 %v218
    %v251 = vunpack.c.l.b16 %v219
    %v252 = vunpack.c.l.b16 %v220
    %v253 = vunpack.c.l.b16 %v221
    %v254 = vunpack.c.l.b16 %v222
    %v255 = vunpack.c.l.b16 %v223
    %v256 = vunpack.c.l.b16 %v224
    %v257 = vunpack.c.l.b16 %v225
    %v258 = vunpack.c.l.b16 %v226
    %v259 = vunpack.c.l.b16 %v227
    %v260 = vunpack.c.l.b16 %v228
    %v261 = vunpack.c.l.b16 %v229
    %v262 = vunpack.c.l.b16 %v230
    %v263 = vunpack.c.l.b16 %v231
    %v264 = vunpack.c.l.b16 %v232
    %v265 = vunpack.c.l.b16 %v233
    %v266 = vpack.c.b16 %v251, %v250
    %v267 = vpack.c.b16 %v253, %v252
    %v268 = vpack.c.b16 %v255, %v254
    %v269 = vpack.c.b16 %v257, %v256
    %v270 = vpack.c.b16 %v259, %v258
    %v271 = vpack.c.b16 %v261, %v260
    %v272 = vpack.c.b16 %v263, %v262
    %v273 = vpack.c.b16 %v265, %v264
    %282 = vmatprep.subr.bf16.mxu0 0
    %283 = vmatpush1.bf16.msra.mxu0 %v266
    %284 = vmatprep.subr.bf16.mxu0 0
    %285 = vmatpush1.bf16.msra.mxu0 %v267
    %286 = vmatprep.subr.bf16.mxu0 0
    %287 = vmatpush1.bf16.msra.mxu0 %v268
    %288 = vmatprep.subr.bf16.mxu0 0
    %289 = vmatpush1.bf16.msra.mxu0 %v269
    %290 = vmatprep.subr.bf16.mxu0 0
    %291 = vmatpush1.bf16.msra.mxu0 %v270
    %292 = vmatprep.subr.bf16.mxu0 0
    %293 = vmatpush1.bf16.msra.mxu0 %v271
    %294 = vmatprep.subr.bf16.mxu0 0
    %295 = vmatpush1.bf16.msra.mxu0 %v272
    %296 = vmatprep.subr.bf16.mxu0 0
    %297 = vmatpush1.bf16.msra.mxu0 %v273
    %298 = vmatprep.subr.bf16.mxu0 0
    %299 = vmatpush1.bf16.msra.mxu0 0
    %300 = vmatprep.subr.bf16.mxu0 0
    %301 = vmatpush1.bf16.msra.mxu0 0
    %302 = vmatprep.subr.bf16.mxu0 0
    %303 = vmatpush1.bf16.msra.mxu0 0
    %304 = vmatprep.subr.bf16.mxu0 0
    %305 = vmatpush1.bf16.msra.mxu0 0
    %306 = vmatprep.subr.bf16.mxu0 0
    %307 = vmatpush1.bf16.msra.mxu0 0
    %308 = vmatprep.subr.bf16.mxu0 0
    %309 = vmatpush1.bf16.msra.mxu0 0
    %310 = vmatprep.subr.bf16.mxu0 0
    %311 = vmatpush1.bf16.msra.mxu0 0
    %312 = vmatprep.subr.bf16.mxu0 0
    %313 = vmatpush1.bf16.msra.mxu0 0
    %314 = vmatprep.mubr.bf16.mxu0 0
    %315 = vmatmul.mubr.bf16.gmra.mrb[0].mxu0 %v217
    %v316 = vpop.f32.mrb[0].mxu0
    %v317 = vadd.f32 0.0, %v316
    %v318 = vpop.f32.mrb[0].mxu0
    %v319 = vpop.f32.mrb[0].mxu0
    %v320 = vadd.f32 0.0, %v319
    %v321 = vpop.f32.mrb[0].mxu0
    %322 = vdwg.mxu0
    %v323 = vadd.f32 %v317, %v320
    %v324 = vrot.slane %v323, 4
    %v325 = vadd.f32 %v323, %v324
    %v326 = vrot.slane %v325, 2
    %v327 = vadd.f32 %v325, %v326
    %v328 = vrot.slane %v327, 1
    %v329 = vadd.f32 %v327, %v328
    %v330 = vmul.f32 %v329, 0.125
    %v331 = vmul.f32 %v317, %v317
    %v332 = vmul.f32 %v320, %v320
    %v333 = vadd.f32 %v331, %v332
    %v334 = vrot.slane %v333, 4
    %v335 = vadd.f32 %v333, %v334
    %v336 = vrot.slane %v335, 2
    %v337 = vadd.f32 %v335, %v336
    %v338 = vrot.slane %v337, 1
    %v339 = vadd.f32 %v337, %v338
    %v340 = vmul.f32 %v339, 0.125
    %v341 = vmul.f32 %v330, %v330
    %v342 = vsub.f32 %v340, %v341
    %v343 = vmax.f32 %v342, 0.0
    %v344 = vadd.f32 %v343, 1e-05
    %v345 = vrsqrt.pop %v344
    %v346 = vsub.f32 0.0, %v330
    %v347 = vmul.f32 %v346, %v345
    %v348 = vmul.f32 %v317, %v345
    %v349 = vmul.f32 %v320, %v345
    %v350 = vadd.f32 %v348, %v347
    %v351 = vadd.f32 %v349, %v347
    %v352 = vmax.f32 %v350, 0.0
    %v353 = vmax.f32 %v351, 0.0
    %v354 = vpack.c.bf16 %v353, %v352
    %v355 = vld [vmem:[#allocation6] sm:$0xf]
    %v356 = vld [vmem:[#allocation6 + $0x4] sm:$0xf]
    %v357 = vld [vmem:[#allocation6 + $0x8] sm:$0xf]
    %v358 = vld [vmem:[#allocation6 + $0xc] sm:$0xf]
    %v359 = vld [vmem:[#allocation6 + $0x10] sm:$0xf]
    %v360 = vld [vmem:[#allocation6 + $0x14] sm:$0xf]
    %v361 = vld [vmem:[#allocation6 + $0x18] sm:$0xf]
    %v362 = vld [vmem:[#allocation6 + $0x1c] sm:$0xf]
    %v363 = vld [vmem:[#allocation6 + $0x20] sm:$0xf]
    %v364 = vld [vmem:[#allocation6 + $0x24] sm:$0xf]
    %v365 = vld [vmem:[#allocation6 + $0x28] sm:$0xf]
    %v366 = vld [vmem:[#allocation6 + $0x2c] sm:$0xf]
    %v367 = vld [vmem:[#allocation6 + $0x30] sm:$0xf]
    %v368 = vld [vmem:[#allocation6 + $0x34] sm:$0xf]
    %v369 = vld [vmem:[#allocation6 + $0x38] sm:$0xf]
    %v370 = vld [vmem:[#allocation6 + $0x3c] sm:$0xf]
    %v371 = vld [vmem:[%s4] sm:$0x1]
    %v373 = vlaneseq
    %v374 = vshrl.u32 %v373, 7
    %v375 = vsub.s32 0, %v374
    %v376 = vrot.slane %v371, %v375
    %v394 = vunpack.c.l.b16 %v355
    %v395 = vunpack.c.l.b16 %v356
    %v396 = vunpack.c.l.b16 %v357
    %v397 = vunpack.c.l.b16 %v358
    %v398 = vunpack.c.l.b16 %v359
    %v399 = vunpack.c.l.b16 %v360
    %v400 = vunpack.c.l.b16 %v361
    %v401 = vunpack.c.l.b16 %v362
    %v402 = vunpack.c.l.b16 %v363
    %v403 = vunpack.c.l.b16 %v364
    %v404 = vunpack.c.l.b16 %v365
    %v405 = vunpack.c.l.b16 %v366
    %v406 = vunpack.c.l.b16 %v367
    %v407 = vunpack.c.l.b16 %v368
    %v408 = vunpack.c.l.b16 %v369
    %v409 = vunpack.c.l.b16 %v370
    %v410 = vpack.c.b16 %v395, %v394
    %v411 = vpack.c.b16 %v397, %v396
    %v412 = vpack.c.b16 %v399, %v398
    %v413 = vpack.c.b16 %v401, %v400
    %v414 = vpack.c.b16 %v403, %v402
    %v415 = vpack.c.b16 %v405, %v404
    %v416 = vpack.c.b16 %v407, %v406
    %v417 = vpack.c.b16 %v409, %v408
    %426 = vmatprep.subr.bf16.mxu0 0
    %427 = vmatpush1.bf16.msra.mxu0 %v410
    %428 = vmatprep.subr.bf16.mxu0 0
    %429 = vmatpush1.bf16.msra.mxu0 %v411
    %430 = vmatprep.subr.bf16.mxu0 0
    %431 = vmatpush1.bf16.msra.mxu0 %v412
    %432 = vmatprep.subr.bf16.mxu0 0
    %433 = vmatpush1.bf16.msra.mxu0 %v413
    %434 = vmatprep.subr.bf16.mxu0 0
    %435 = vmatpush1.bf16.msra.mxu0 %v414
    %436 = vmatprep.subr.bf16.mxu0 0
    %437 = vmatpush1.bf16.msra.mxu0 %v415
    %438 = vmatprep.subr.bf16.mxu0 0
    %439 = vmatpush1.bf16.msra.mxu0 %v416
    %440 = vmatprep.subr.bf16.mxu0 0
    %441 = vmatpush1.bf16.msra.mxu0 %v417
    %442 = vmatprep.subr.bf16.mxu0 0
    %443 = vmatpush1.bf16.msra.mxu0 0
    %444 = vmatprep.subr.bf16.mxu0 0
    %445 = vmatpush1.bf16.msra.mxu0 0
    %446 = vmatprep.subr.bf16.mxu0 0
    %447 = vmatpush1.bf16.msra.mxu0 0
    %448 = vmatprep.subr.bf16.mxu0 0
    %449 = vmatpush1.bf16.msra.mxu0 0
    %450 = vmatprep.subr.bf16.mxu0 0
    %451 = vmatpush1.bf16.msra.mxu0 0
    %452 = vmatprep.subr.bf16.mxu0 0
    %453 = vmatpush1.bf16.msra.mxu0 0
    %454 = vmatprep.subr.bf16.mxu0 0
    %455 = vmatpush1.bf16.msra.mxu0 0
    %456 = vmatprep.subr.bf16.mxu0 0
    %457 = vmatpush1.bf16.msra.mxu0 0
    %458 = vmatprep.mubr.bf16.mxu0 0
    %459 = vmatmul.mubr.bf16.gmra.mrb[0].mxu0 %v354
    %v460 = vpop.f32.mrb[0].mxu0
    %v461 = vadd.f32 %v376, %v460
    %v462 = vpop.f32.mrb[0].mxu0
    %v463 = vpop.f32.mrb[0].mxu0
    %v464 = vadd.f32 %v376, %v463
    %v465 = vpop.f32.mrb[0].mxu0
    %466 = vdwg.mxu0
    %v467 = vtanh.pop %v461
    %v468 = vtanh.pop %v464
    %v469 = vpack.c.bf16 %v468, %v467
    %v471 = vunpack.c.l.b16 %v469
    %v472 = vunpack.c.h.b16 %v469
    %v473 = vpack.c.b16 %v471, %v471
    %v474 = vpack.c.b16 %v472, %v472
    %477 = vst [vmem:[%s5] sm:$0xf] %v473
    %478 = vst [vmem:[%s5 + $0x4] sm:$0xf] %v474
    // Predicated region
    $region34: #{actor_forward.1} parent=1 // pred_check
      _
    $region35: #{actor_forward.1} parent=1 // pred_check_branch
      %480 = sbr.rel (0) target = $region37
    $region36: #{actor_forward.1} parent=1 // pred_region
      _
    $region37: #{actor_forward.1} parent=1 // pred_fallthru
      _
    // Predicated region
    $region38: #{actor_forward.1} parent=1 // pred_check
      _
    $region39: #{actor_forward.1} parent=1 // pred_check_branch
      %482 = sbr.rel (0) target = $region41
    $region40: #{actor_forward.1} parent=1 // pred_region
      _
    $region41: #{actor_forward.1} parent=1 // pred_fallthru
      _
    %483 = vsyncpa [#allocation3], 1
    %484 = vsyncpa [#allocation5], 1

</llo_original>
